<compile_context>
chip_gen: v7x
topology: tpu7x:2x2x1
jax: 0.10.0
libtpu: 0.0.40
codegen_flags: <defaults>
</compile_context>

<pallas_src>
import functools

import numpy as np
import jax
import jax.numpy as jnp
from jax.experimental import pallas as pl
from jax.experimental.pallas import tpu as pltpu


def _coord_att_kernel(x_ref, p_ref, eh_ref, ew_ref,
                      w1_ref, b1_ref, wh_ref, bh_ref, ww_ref, bw_ref,
                      o_ref, *, tb, C, H, W):
    """One grid step: a (tb*C, H*W) slab of the input/output."""
    L = H + W

    xs = x_ref[...]                                               # (tb*C, HW), input dtype

    # Coordinate pooling for the whole slab in ONE MXU matmul.
    # p_ref = [eh.T / W | ew.T / H]: columns [0:H] = mean over W,
    #                                columns [H:H+W] = mean over H.
    pooled = jnp.dot(xs, p_ref[...],
                     preferred_element_type=jnp.float32)          # (tb*C, H+W) f32
    pooled3 = pooled.reshape(tb, C, L)                            # layout-free split

    # conv1 (+ folded eval-mode BN) + h_swish, once for both branches.
    w1 = w1_ref[...]                                              # (mip, C)
    mip = w1.shape[0]
    w1b = jnp.broadcast_to(w1, (tb, mip, C))
    y = jax.lax.dot_general(w1b, pooled3, (((2,), (1,)), ((0,), (0,))),
                            preferred_element_type=jnp.float32)   # (tb, mip, H+W)
    y = y + b1_ref[...]                                           # (mip,1) broadcast
    y = y * (jnp.clip(y + 3.0, 0.0, 6.0) * (1.0 / 6.0))           # h_swish

    y_h = y[:, :, :H]                                             # (tb, mip, H)
    y_w = y[:, :, H:]                                             # (tb, mip, W)

    # Gate convolutions (1x1, mip -> C), batched over tb.
    whb = jnp.broadcast_to(wh_ref[...], (tb, C, mip))
    wwb = jnp.broadcast_to(ww_ref[...], (tb, C, mip))
    a_h = jax.nn.sigmoid(
        jax.lax.dot_general(whb, y_h, (((2,), (1,)), ((0,), (0,))),
                            preferred_element_type=jnp.float32) + bh_ref[...])   # (tb, C, H)
    a_w = jax.nn.sigmoid(
        jax.lax.dot_general(wwb, y_w, (((2,), (1,)), ((0,), (0,))),
                            preferred_element_type=jnp.float32) + bw_ref[...])   # (tb, C, W)

    # Broadcast gates back to (tb*C, HW) with exact one-hot matmuls
    # (no concat / transpose / lane shuffles of the big slab).
    ah_full = jnp.dot(a_h.reshape(tb * C, H), eh_ref[...],
                      preferred_element_type=jnp.float32)          # (tb*C, HW)
    aw_full = jnp.dot(a_w.reshape(tb * C, W), ew_ref[...],
                      preferred_element_type=jnp.float32)          # (tb*C, HW)

    o_ref[...] = (xs.astype(jnp.float32) * aw_full * ah_full).astype(o_ref.dtype)


def _pool_broadcast_matrices(H, W):
    HW = H * W
    p = np.arange(HW)
    eh = (p[None, :] // W == np.arange(H)[:, None]).astype(np.float32)   # (H, HW)
    ew = (p[None, :] % W == np.arange(W)[:, None]).astype(np.float32)    # (W, HW)
    P = np.concatenate([eh.T / float(W), ew.T / float(H)], axis=1)       # (HW, H+W)
    return P, eh, ew


def coord_att_pallas(x, params, *, eps=1e-5, target_slab_bytes=4 << 20):
    N, C, H, W = x.shape
    HW = H * W
    mip = params["w1"].shape[0]
    oup = params["wh"].shape[0]
    assert oup == C, "CoordAtt identity multiply requires oup == inp"

    # Fold eval-mode BatchNorm into conv1 (exact for inference).
    # TODO(synk): training-mode BN (batch statistics) is not implemented.
    inv_std = 1.0 / jnp.sqrt(params["bn_var"] + eps)
    scale = params["bn_gamma"] * inv_std                                  # (mip,)
    w1_eff = params["w1"] * scale[:, None]                                # (mip, C)
    b1_eff = (params["b1"] - params["bn_mean"]) * scale + params["bn_beta"]

    P, eh, ew = _pool_broadcast_matrices(H, W)

    # ---- Pick the per-step batch slab from a VMEM budget -------------------
    itemsize = jnp.dtype(x.dtype).itemsize
    per_img = C * HW * itemsize
    tb = max(1, int(target_slab_bytes) // per_img)
    tb = min(tb, N)
    if N >= 2:                       # >= 2 grid steps so v7x's two TCs both work
        tb = min(tb, pl.cdiv(N, 2))
    if tb >= 8:                      # MXU row alignment (TB*C multiple of 256 at C=32)
        tb -= tb % 8
    elif tb >= 4:
        tb -= tb % 4
    grid_n = pl.cdiv(N, tb)
    n_pad = grid_n * tb

    x2 = x.reshape(N * C, HW)
    if n_pad != N:                   # ragged batch: pad with zero images (discarded)
        x2 = jnp.concatenate(
            [x2, jnp.zeros(((n_pad - N) * C, HW), x2.dtype)], axis=0)

    slab_bytes = tb * per_img
    vmem_limit = int(min(56 << 20, max(32 << 20, 4 * slab_bytes + (4 << 20))))

    def const_spec(shape):
        return pl.BlockSpec(shape, lambda i, _s=shape: (0,) * len(_s))

    kernel = functools.partial(_coord_att_kernel, tb=tb, C=C, H=H, W=W)

    out = pl.pallas_call(
        kernel,
        out_shape=jax.ShapeDtypeStruct((n_pad * C, HW), x.dtype),
        grid=(grid_n,),
        in_specs=[
            pl.BlockSpec((tb * C, HW), lambda i: (i, 0)),   # x slab (lane-dense)
            const_spec((HW, H + W)),                         # fused pooling matrix
            const_spec((H, HW)),                             # broadcast-over-W one-hot
            const_spec((W, HW)),                             # broadcast-over-H one-hot
            const_spec((mip, C)),                            # conv1 weight (BN folded)
            const_spec((mip, 1)),                            # conv1 bias   (BN folded)
            const_spec((C, mip)),                            # conv_h weight
            const_spec((C, 1)),                              # conv_h bias
            const_spec((C, mip)),                            # conv_w weight
            const_spec((C, 1)),                              # conv_w bias
        ],
        out_specs=pl.BlockSpec((tb * C, HW), lambda i: (i, 0)),
        compiler_params=pltpu.CompilerParams(
            dimension_semantics=("parallel",),
            vmem_limit_bytes=vmem_limit),
    )(
        x2,
        jnp.asarray(P, dtype=x.dtype),   # matmul operand in activation dtype
        jnp.asarray(eh), jnp.asarray(ew),
        w1_eff, b1_eff[:, None],
        params["wh"], params["bh"][:, None],
        params["ww"], params["bw"][:, None],
    )
    return out[: N * C].reshape(N, C, H, W)


def coord_att_reference(x, params, *, eps=1e-5):
    """Pure-JAX reference mirroring the PyTorch forward (eval mode) exactly."""
    N, C, H, W = x.shape
    x_h = jnp.mean(x, axis=3, keepdims=True)                               # (N,C,H,1)
    x_w = jnp.transpose(jnp.mean(x, axis=2, keepdims=True), (0, 1, 3, 2))  # (N,C,W,1)
    y = jnp.concatenate([x_h, x_w], axis=2)                                # (N,C,H+W,1)
    y = jnp.einsum("mc,nchw->nmhw", params["w1"], y) \
        + params["b1"][None, :, None, None]
    inv_std = 1.0 / jnp.sqrt(params["bn_var"] + eps)
    y = (y - params["bn_mean"][None, :, None, None]) \
        * (params["bn_gamma"] * inv_std)[None, :, None, None] \
        + params["bn_beta"][None, :, None, None]
    y = y * jnp.clip(y + 3.0, 0.0, 6.0) / 6.0                              # h_swish
    y_h = y[:, :, :H, :]                                                   # (N,mip,H,1)
    y_w = jnp.transpose(y[:, :, H:, :], (0, 1, 3, 2))                      # (N,mip,1,W)
    a_h = jax.nn.sigmoid(jnp.einsum("om,nmhw->nohw", params["wh"], y_h)
                         + params["bh"][None, :, None, None])
    a_w = jax.nn.sigmoid(jnp.einsum("om,nmhw->nohw", params["ww"], y_w)
                         + params["bw"][None, :, None, None])
    return x * a_w * a_h


def init_coord_att_params(key, inp, oup, reduction=32):
    mip = max(8, inp // reduction)
    ks = jax.random.split(key, 10)

    def uniform(k, shape, fan_in):
        bound = 1.0 / np.sqrt(fan_in)
        return jax.random.uniform(k, shape, jnp.float32, -bound, bound)

    return {
        "w1": uniform(ks[0], (mip, inp), inp),        # conv1 (1x1) weight, squeezed
        "b1": uniform(ks[1], (mip,), inp),
        "wh": uniform(ks[2], (oup, mip), mip),        # conv_h (1x1) weight
        "bh": uniform(ks[3], (oup,), mip),
        "ww": uniform(ks[4], (oup, mip), mip),        # conv_w (1x1) weight
        "bw": uniform(ks[5], (oup,), mip),
        "bn_gamma": 1.0 + 0.1 * jax.random.normal(ks[6], (mip,), jnp.float32),
        "bn_beta": 0.1 * jax.random.normal(ks[7], (mip,), jnp.float32),
        "bn_mean": 0.1 * jax.random.normal(ks[8], (mip,), jnp.float32),
        "bn_var": 0.5 + jnp.abs(jax.random.normal(ks[9], (mip,), jnp.float32)),
    }


if __name__ == "__main__":
    # CoordAtt(inp=32, oup=32, reduction=32) -> mip = max(8, 1) = 8
    inp = oup = 32
    H = Wd = 16

    root = jax.random.PRNGKey(0)
    kp, kx = jax.random.split(root)
    params = init_coord_att_params(kp, inp, oup, reduction=32)

    # N=2: primary case; N=5: exercises the ragged / padded-batch path.
    for N in (2, 5):
        x = jax.random.normal(jax.random.fold_in(kx, N), (N, inp, H, Wd), jnp.float32)
        y = coord_att_pallas(x, params)
        jax.block_until_ready(y)

        y_ref = coord_att_reference(x, params)
        max_err = float(jnp.max(jnp.abs(y - y_ref)))
        assert y.shape == x.shape
        assert jnp.allclose(y, y_ref, atol=1e-4, rtol=1e-4), \
            f"N={N}: mismatch, max abs err {max_err}"

    print("KERNEL_OK")
</pallas_src>

<mosaic_0001>
module attributes {stable_mosaic.version = 11 : i64} {
  func.func @_coord_att_kernel(%arg0: i32, %arg1: memref<32x256xf32, #tpu.memory_space<vmem>>, %arg2: memref<256x32xf32, #tpu.memory_space<vmem>>, %arg3: memref<16x256xf32, #tpu.memory_space<vmem>>, %arg4: memref<16x256xf32, #tpu.memory_space<vmem>>, %arg5: memref<8x32xf32, #tpu.memory_space<vmem>>, %arg6: memref<8x1xf32, #tpu.memory_space<vmem>>, %arg7: memref<32x8xf32, #tpu.memory_space<vmem>>, %arg8: memref<32x1xf32, #tpu.memory_space<vmem>>, %arg9: memref<32x8xf32, #tpu.memory_space<vmem>>, %arg10: memref<32x1xf32, #tpu.memory_space<vmem>>, %arg11: memref<32x256xf32, #tpu.memory_space<vmem>>) attributes {dimension_semantics = [#tpu.dimension_semantics<parallel>], iteration_bounds = array<i64: 2>, scalar_prefetch = 0 : i64, scratch_operands = 0 : i64, tpu.core_type = #tpu.core_type<tc>, window_params = [{transform_indices = @transform_0, window_bounds = array<i64: 32, 256>}, {pipeline_mode = #tpu.pipeline_mode<synchronous>, transform_indices = @transform_1, window_bounds = array<i64: 256, 32>}, {pipeline_mode = #tpu.pipeline_mode<synchronous>, transform_indices = @transform_2, window_bounds = array<i64: 16, 256>}, {pipeline_mode = #tpu.pipeline_mode<synchronous>, transform_indices = @transform_3, window_bounds = array<i64: 16, 256>}, {pipeline_mode = #tpu.pipeline_mode<synchronous>, transform_indices = @transform_4, window_bounds = array<i64: 8, 32>}, {pipeline_mode = #tpu.pipeline_mode<synchronous>, transform_indices = @transform_5, window_bounds = array<i64: 8, 1>}, {pipeline_mode = #tpu.pipeline_mode<synchronous>, transform_indices = @transform_6, window_bounds = array<i64: 32, 8>}, {pipeline_mode = #tpu.pipeline_mode<synchronous>, transform_indices = @transform_7, window_bounds = array<i64: 32, 1>}, {pipeline_mode = #tpu.pipeline_mode<synchronous>, transform_indices = @transform_8, window_bounds = array<i64: 32, 8>}, {pipeline_mode = #tpu.pipeline_mode<synchronous>, transform_indices = @transform_9, window_bounds = array<i64: 32, 1>}, {transform_indices = @transform_10, window_bounds = array<i64: 32, 256>}]} {
    %c0 = arith.constant 0 : index
    %c0_0 = arith.constant 0 : index
    %0 = vector.load %arg1[%c0, %c0_0] : memref<32x256xf32, #tpu.memory_space<vmem>>, vector<32x256xf32>
    %c0_1 = arith.constant 0 : index
    %c0_2 = arith.constant 0 : index
    %1 = vector.load %arg2[%c0_1, %c0_2] : memref<256x32xf32, #tpu.memory_space<vmem>>, vector<256x32xf32>
    %cst = arith.constant dense<0.000000e+00> : vector<32x32xf32>
    %2 = tpu.matmul %0, %1, %cst {dimension_numbers = #tpu.dot_dimension_numbers<[1], [0], [0], [1], [0, 0, 1, 1], [], []>} : vector<32x256xf32>, vector<256x32xf32>, vector<32x32xf32> -> vector<32x32xf32>
    %3 = vector.shape_cast %2 : vector<32x32xf32> to vector<1x32x32xf32>
    %c0_3 = arith.constant 0 : index
    %c0_4 = arith.constant 0 : index
    %4 = vector.load %arg5[%c0_3, %c0_4] : memref<8x32xf32, #tpu.memory_space<vmem>>, vector<8x32xf32>
    %5 = vector.shape_cast %4 : vector<8x32xf32> to vector<1x8x32xf32>
    %cst_5 = arith.constant dense<0.000000e+00> : vector<1x8x32xf32>
    %6 = tpu.matmul %5, %3, %cst_5 {dimension_numbers = #tpu.dot_dimension_numbers<[2], [1], [1], [2], [0, 0, 0, 1, 1, 2], [0], [0]>} : vector<1x8x32xf32>, vector<1x32x32xf32>, vector<1x8x32xf32> -> vector<1x8x32xf32>
    %c0_6 = arith.constant 0 : index
    %c0_7 = arith.constant 0 : index
    %7 = vector.load %arg6[%c0_6, %c0_7] : memref<8x1xf32, #tpu.memory_space<vmem>>, vector<8x1xf32>
    %8 = vector.shape_cast %7 : vector<8x1xf32> to vector<1x8x1xf32>
    %9 = vector.broadcast %8 : vector<1x8x1xf32> to vector<1x8x32xf32>
    %10 = arith.addf %6, %9 : vector<1x8x32xf32>
    %cst_8 = arith.constant 3.000000e+00 : f32
    %11 = vector.broadcast %cst_8 : f32 to vector<1x8x32xf32>
    %12 = arith.addf %10, %11 : vector<1x8x32xf32>
    %cst_9 = arith.constant 0.000000e+00 : f32
    %cst_10 = arith.constant 6.000000e+00 : f32
    %13 = vector.broadcast %cst_9 : f32 to vector<1x8x32xf32>
    %14 = arith.maximumf %13, %12 : vector<1x8x32xf32>
    %15 = vector.broadcast %cst_10 : f32 to vector<1x8x32xf32>
    %16 = arith.minimumf %15, %14 : vector<1x8x32xf32>
    %cst_11 = arith.constant 0.166666672 : f32
    %17 = vector.broadcast %cst_11 : f32 to vector<1x8x32xf32>
    %18 = arith.mulf %16, %17 : vector<1x8x32xf32>
    %19 = arith.mulf %10, %18 : vector<1x8x32xf32>
    %20 = vector.extract_strided_slice %19 {offsets = [0, 0, 0], sizes = [1, 8, 16], strides = [1, 1, 1]} : vector<1x8x32xf32> to vector<1x8x16xf32>
    %21 = vector.extract_strided_slice %19 {offsets = [0, 0, 16], sizes = [1, 8, 16], strides = [1, 1, 1]} : vector<1x8x32xf32> to vector<1x8x16xf32>
    %c0_12 = arith.constant 0 : index
    %c0_13 = arith.constant 0 : index
    %22 = vector.load %arg7[%c0_12, %c0_13] : memref<32x8xf32, #tpu.memory_space<vmem>>, vector<32x8xf32>
    %23 = vector.shape_cast %22 : vector<32x8xf32> to vector<1x32x8xf32>
    %c0_14 = arith.constant 0 : index
    %c0_15 = arith.constant 0 : index
    %24 = vector.load %arg9[%c0_14, %c0_15] : memref<32x8xf32, #tpu.memory_space<vmem>>, vector<32x8xf32>
    %25 = vector.shape_cast %24 : vector<32x8xf32> to vector<1x32x8xf32>
    %cst_16 = arith.constant dense<0.000000e+00> : vector<1x32x16xf32>
    %26 = tpu.matmul %23, %20, %cst_16 {dimension_numbers = #tpu.dot_dimension_numbers<[2], [1], [1], [2], [0, 0, 0, 1, 1, 2], [0], [0]>} : vector<1x32x8xf32>, vector<1x8x16xf32>, vector<1x32x16xf32> -> vector<1x32x16xf32>
    %c0_17 = arith.constant 0 : index
    %c0_18 = arith.constant 0 : index
    %27 = vector.load %arg8[%c0_17, %c0_18] : memref<32x1xf32, #tpu.memory_space<vmem>>, vector<32x1xf32>
    %28 = vector.shape_cast %27 : vector<32x1xf32> to vector<1x32x1xf32>
    %29 = vector.broadcast %28 : vector<1x32x1xf32> to vector<1x32x16xf32>
    %30 = arith.addf %26, %29 : vector<1x32x16xf32>
    %31 = arith.negf %30 : vector<1x32x16xf32>
    %32 = math.exp %31 : vector<1x32x16xf32>
    %cst_19 = arith.constant 1.000000e+00 : f32
    %33 = vector.broadcast %cst_19 : f32 to vector<1x32x16xf32>
    %34 = arith.addf %33, %32 : vector<1x32x16xf32>
    %35 = arith.divf %33, %34 : vector<1x32x16xf32>
    %cst_20 = arith.constant dense<0.000000e+00> : vector<1x32x16xf32>
    %36 = tpu.matmul %25, %21, %cst_20 {dimension_numbers = #tpu.dot_dimension_numbers<[2], [1], [1], [2], [0, 0, 0, 1, 1, 2], [0], [0]>} : vector<1x32x8xf32>, vector<1x8x16xf32>, vector<1x32x16xf32> -> vector<1x32x16xf32>
    %c0_21 = arith.constant 0 : index
    %c0_22 = arith.constant 0 : index
    %37 = vector.load %arg10[%c0_21, %c0_22] : memref<32x1xf32, #tpu.memory_space<vmem>>, vector<32x1xf32>
    %38 = vector.shape_cast %37 : vector<32x1xf32> to vector<1x32x1xf32>
    %39 = vector.broadcast %38 : vector<1x32x1xf32> to vector<1x32x16xf32>
    %40 = arith.addf %36, %39 : vector<1x32x16xf32>
    %41 = arith.negf %40 : vector<1x32x16xf32>
    %42 = math.exp %41 : vector<1x32x16xf32>
    %cst_23 = arith.constant 1.000000e+00 : f32
    %43 = vector.broadcast %cst_23 : f32 to vector<1x32x16xf32>
    %44 = arith.addf %43, %42 : vector<1x32x16xf32>
    %45 = arith.divf %43, %44 : vector<1x32x16xf32>
    %46 = vector.shape_cast %35 : vector<1x32x16xf32> to vector<32x16xf32>
    %c0_24 = arith.constant 0 : index
    %c0_25 = arith.constant 0 : index
    %47 = vector.load %arg3[%c0_24, %c0_25] : memref<16x256xf32, #tpu.memory_space<vmem>>, vector<16x256xf32>
    %cst_26 = arith.constant dense<0.000000e+00> : vector<32x256xf32>
    %48 = tpu.matmul %46, %47, %cst_26 {dimension_numbers = #tpu.dot_dimension_numbers<[1], [0], [0], [1], [0, 0, 1, 1], [], []>} : vector<32x16xf32>, vector<16x256xf32>, vector<32x256xf32> -> vector<32x256xf32>
    %49 = vector.shape_cast %45 : vector<1x32x16xf32> to vector<32x16xf32>
    %c0_27 = arith.constant 0 : index
    %c0_28 = arith.constant 0 : index
    %50 = vector.load %arg4[%c0_27, %c0_28] : memref<16x256xf32, #tpu.memory_space<vmem>>, vector<16x256xf32>
    %cst_29 = arith.constant dense<0.000000e+00> : vector<32x256xf32>
    %51 = tpu.matmul %49, %50, %cst_29 {dimension_numbers = #tpu.dot_dimension_numbers<[1], [0], [0], [1], [0, 0, 1, 1], [], []>} : vector<32x16xf32>, vector<16x256xf32>, vector<32x256xf32> -> vector<32x256xf32>
    %52 = arith.mulf %0, %51 : vector<32x256xf32>
    %53 = arith.mulf %52, %48 : vector<32x256xf32>
    %c0_30 = arith.constant 0 : index
    %c0_31 = arith.constant 0 : index
    %54 = vector.load %arg11[%c0_30, %c0_31] : memref<32x256xf32, #tpu.memory_space<vmem>>, vector<32x256xf32>
    tpu.vector_store %arg11[%c0_30, %c0_31], %53 {strides = array<i32>} : memref<32x256xf32, #tpu.memory_space<vmem>>, vector<32x256xf32>,
    return
  }
  func.func @transform_0(%arg0: i32) -> (i32, i32) {
    %c0_i32 = arith.constant 0 : i32
    %c0_i32_0 = arith.constant 0 : i32
    return %arg0, %c0_i32 : i32, i32
  }
  func.func @transform_1(%arg0: i32) -> (i32, i32) {
    %c0_i32 = arith.constant 0 : i32
    %c0_i32_0 = arith.constant 0 : i32
    %c0_i32_1 = arith.constant 0 : i32
    return %c0_i32, %c0_i32_0 : i32, i32
  }
  func.func @transform_2(%arg0: i32) -> (i32, i32) {
    %c0_i32 = arith.constant 0 : i32
    %c0_i32_0 = arith.constant 0 : i32
    %c0_i32_1 = arith.constant 0 : i32
    return %c0_i32, %c0_i32_0 : i32, i32
  }
  func.func @transform_3(%arg0: i32) -> (i32, i32) {
    %c0_i32 = arith.constant 0 : i32
    %c0_i32_0 = arith.constant 0 : i32
    %c0_i32_1 = arith.constant 0 : i32
    return %c0_i32, %c0_i32_0 : i32, i32
  }
  func.func @transform_4(%arg0: i32) -> (i32, i32) {
    %c0_i32 = arith.constant 0 : i32
    %c0_i32_0 = arith.constant 0 : i32
    %c0_i32_1 = arith.constant 0 : i32
    return %c0_i32, %c0_i32_0 : i32, i32
  }
  func.func @transform_5(%arg0: i32) -> (i32, i32) {
    %c0_i32 = arith.constant 0 : i32
    %c0_i32_0 = arith.constant 0 : i32
    %c0_i32_1 = arith.constant 0 : i32
    return %c0_i32, %c0_i32_0 : i32, i32
  }
  func.func @transform_6(%arg0: i32) -> (i32, i32) {
    %c0_i32 = arith.constant 0 : i32
    %c0_i32_0 = arith.constant 0 : i32
    %c0_i32_1 = arith.constant 0 : i32
    return %c0_i32, %c0_i32_0 : i32, i32
  }
  func.func @transform_7(%arg0: i32) -> (i32, i32) {
    %c0_i32 = arith.constant 0 : i32
    %c0_i32_0 = arith.constant 0 : i32
    %c0_i32_1 = arith.constant 0 : i32
    return %c0_i32, %c0_i32_0 : i32, i32
  }
  func.func @transform_8(%arg0: i32) -> (i32, i32) {
    %c0_i32 = arith.constant 0 : i32
    %c0_i32_0 = arith.constant 0 : i32
    %c0_i32_1 = arith.constant 0 : i32
    return %c0_i32, %c0_i32_0 : i32, i32
  }
  func.func @transform_9(%arg0: i32) -> (i32, i32) {
    %c0_i32 = arith.constant 0 : i32
    %c0_i32_0 = arith.constant 0 : i32
    %c0_i32_1 = arith.constant 0 : i32
    return %c0_i32, %c0_i32_0 : i32, i32
  }
  func.func @transform_10(%arg0: i32) -> (i32, i32) {
    %c0_i32 = arith.constant 0 : i32
    %c0_i32_0 = arith.constant 0 : i32
    return %arg0, %c0_i32 : i32, i32
  }
}

</mosaic_0001>

<llo_original>
// kernel: tpu_custom_call.1
$region0: #{tpu_custom_call.1}
  #allocation0 [shape = 'u32[]', space=smem, size = 0x4, offset = 0x4, fixed_abs, tag = 'smem constant byte address 0x4 - core index']
  #allocation1 [shape = 'u32[144,128]{1,0:T(1,128)}', space=vmem, size = 0x12000, scoped, tag = 'internal scratch']
  %s0 = inlined_call_operand.vmem [shape: f32[64,256], index: 0, kind: input, shape index: {}]
  %s1 = inlined_call_operand.vmem [shape: f32[256,32], index: 1, kind: input, shape index: {}]
  %s2 = inlined_call_operand.vmem [shape: f32[16,256], index: 2, kind: input, shape index: {}]
  %s3 = inlined_call_operand.vmem [shape: f32[16,256], index: 3, kind: input, shape index: {}]
  %s4 = inlined_call_operand.vmem [shape: f32[8,32], index: 4, kind: input, shape index: {}]
  %s5 = inlined_call_operand.vmem [shape: f32[8,1], index: 5, kind: input, shape index: {}]
  %s6 = inlined_call_operand.vmem [shape: f32[32,8], index: 6, kind: input, shape index: {}]
  %s7 = inlined_call_operand.vmem [shape: f32[32,1], index: 7, kind: input, shape index: {}]
  %s8 = inlined_call_operand.vmem [shape: f32[32,8], index: 8, kind: input, shape index: {}]
  %s9 = inlined_call_operand.vmem [shape: f32[32,1], index: 9, kind: input, shape index: {}]
  %s10 = inlined_call_operand.hbm [shape: f32[64,256], index: 10, kind: output, shape index: {}]
  %s11 = sld [smem:[#allocation0]]
  $region73: #{tpu_custom_call.1} parent=0
    _
  %s13 = ssub.s32 1, %s11
  %s14 = scalar_select 0, %s13, %s11
  $region1: #{tpu_custom_call.1} parent=0
    #allocation2 [shape = 'u8[65536]{0}', space=vmem, size = 0x10000, scoped, tag = 'output window, operand 0']
    #allocation3 [shape = 's32[2]{0}', space=sflag, size = 0x8, scoped, tag = 'scoped memory for tpu_custom_call.1']
    %15 = vsyncpa [#allocation3], 0
    %s16 = scalar_lea.sflag [#allocation3], 1
    %17 = vsyncpa %s16, 0
    loop: start=0, step=1, limit=4
    $region2: #{tpu_custom_call.1} parent=1 // loop_pre_header
      _
    $region3: #{tpu_custom_call.1} parent=1 // loop_header
      %s19 = sphi 0, %s23
      %p20 = scmp.ge.s32.totalorder %s19, 4
      %s29 = sphi 0, %s31
      %s32 = sphi 0, %s29
      %s33 = sphi 0, %s32
      %s49 = sphi 0, %s33
      %s53 = sphi 0, %s53
      %s55 = sphi 0, %s53
      %s56 = sphi 0, %s55
      %s70 = sphi 0, %s56
      %s74 = sphi 0, %s74
      %s76 = sphi 0, %s74
      %s77 = sphi 0, %s76
      %s91 = sphi 0, %s77
      %s95 = sphi 0, %s95
      %s97 = sphi 0, %s95
      %s98 = sphi 0, %s97
      %s112 = sphi 0, %s98
      %s116 = sphi 0, %s116
      %s118 = sphi 0, %s116
      %s119 = sphi 0, %s118
      %s133 = sphi 0, %s119
      %s137 = sphi 0, %s137
      %s139 = sphi 0, %s137
      %s140 = sphi 0, %s139
      %s154 = sphi 0, %s140
      %s158 = sphi 0, %s158
      %s160 = sphi 0, %s158
      %s161 = sphi 0, %s160
      %s175 = sphi 0, %s161
      %s179 = sphi 0, %s179
      %s181 = sphi 0, %s179
      %s182 = sphi 0, %s181
      %s196 = sphi 0, %s182
      %s200 = sphi 0, %s200
      %s202 = sphi 0, %s200
      %s203 = sphi 0, %s202
      %s217 = sphi 0, %s203
      %s221 = sphi 0, %s221
      %s223 = sphi 0, %s221
      %s224 = sphi 0, %s223
      %s238 = sphi 0, %s224
      %s244 = sphi 0, %s246
      %s247 = sphi 0, %s244
      %s248 = sphi 0, %s247
      %s264 = sphi 0, %s248
    $region4: #{tpu_custom_call.1} parent=1 // loop_header_branch
      %22 = sbr.rel (%p20) target = $region8
    $region5: #{tpu_custom_call.1} parent=1 // loop_body
      %s24 = ssub.s32 %s19, 1
      %s25 = ssub.s32 %s19, 2
      %s26 = sadd.s32 %s19, 1
      %s27 = ssub.s32 %s19, %s26
      %p28 = scmp.eq.s32.totalorder %s27, 0
      %s30 = sadd.s32 %s29, 1
      %s31 = scalar_select %p28, %s29, %s30
      %p34 = pneg %p28
      %p35 = scmp.eq.s32.totalorder %s19, 1
      %p36 = por %p34, %p35
      %p37 = scmp.ne.s32.totalorder %s29, %s32
      %p38 = scmp.eq.s32.totalorder %s19, 0
      %p39 = por %p37, %p38
      %p40 = scmp.ne.s32.totalorder %s29, %s32
      %p41 = scmp.eq.s32.totalorder %s24, 1
      %p42 = por %p40, %p41
      %p43 = scmp.ne.s32.totalorder %s32, %s33
      %p44 = scmp.eq.s32.totalorder %s24, 0
      %p45 = por %p43, %p44
      %p46 = scmp.ne.s32.totalorder %s32, %s33
      %p47 = scmp.eq.s32.totalorder %s25, 1
      %p48 = por %p46, %p47
      %p50 = scmp.ne.s32.totalorder %s33, %s49
      %p51 = scmp.eq.s32.totalorder %s25, 0
      %p52 = por %p50, %p51
      %s54 = sadd.s32 %s53, 1
      %p57 = scmp.eq.s32.totalorder %s19, 1
      %p58 = scmp.ne.s32.totalorder %s53, %s55
      %p59 = scmp.eq.s32.totalorder %s19, 0
      %p60 = por %p58, %p59
      %p61 = scmp.ne.s32.totalorder %s53, %s55
      %p62 = scmp.eq.s32.totalorder %s24, 1
      %p63 = por %p61, %p62
      %p64 = scmp.ne.s32.totalorder %s55, %s56
      %p65 = scmp.eq.s32.totalorder %s24, 0
      %p66 = por %p64, %p65
      %p67 = scmp.ne.s32.totalorder %s55, %s56
      %p68 = scmp.eq.s32.totalorder %s25, 1
      %p69 = por %p67, %p68
      %p71 = scmp.ne.s32.totalorder %s56, %s70
      %p72 = scmp.eq.s32.totalorder %s25, 0
      %p73 = por %p71, %p72
      %s75 = sadd.s32 %s74, 1
      %p78 = scmp.eq.s32.totalorder %s19, 1
      %p79 = scmp.ne.s32.totalorder %s74, %s76
      %p80 = scmp.eq.s32.totalorder %s19, 0
      %p81 = por %p79, %p80
      %p82 = scmp.ne.s32.totalorder %s74, %s76
      %p83 = scmp.eq.s32.totalorder %s24, 1
      %p84 = por %p82, %p83
      %p85 = scmp.ne.s32.totalorder %s76, %s77
      %p86 = scmp.eq.s32.totalorder %s24, 0
      %p87 = por %p85, %p86
      %p88 = scmp.ne.s32.totalorder %s76, %s77
      %p89 = scmp.eq.s32.totalorder %s25, 1
      %p90 = por %p88, %p89
      %p92 = scmp.ne.s32.totalorder %s77, %s91
      %p93 = scmp.eq.s32.totalorder %s25, 0
      %p94 = por %p92, %p93
      %s96 = sadd.s32 %s95, 1
      %p99 = scmp.eq.s32.totalorder %s19, 1
      %p100 = scmp.ne.s32.totalorder %s95, %s97
      %p101 = scmp.eq.s32.totalorder %s19, 0
      %p102 = por %p100, %p101
      %p103 = scmp.ne.s32.totalorder %s95, %s97
      %p104 = scmp.eq.s32.totalorder %s24, 1
      %p105 = por %p103, %p104
      %p106 = scmp.ne.s32.totalorder %s97, %s98
      %p107 = scmp.eq.s32.totalorder %s24, 0
      %p108 = por %p106, %p107
      %p109 = scmp.ne.s32.totalorder %s97, %s98
      %p110 = scmp.eq.s32.totalorder %s25, 1
      %p111 = por %p109, %p110
      %p113 = scmp.ne.s32.totalorder %s98, %s112
      %p114 = scmp.eq.s32.totalorder %s25, 0
      %p115 = por %p113, %p114
      %s117 = sadd.s32 %s116, 1
      %p120 = scmp.eq.s32.totalorder %s19, 1
      %p121 = scmp.ne.s32.totalorder %s116, %s118
      %p122 = scmp.eq.s32.totalorder %s19, 0
      %p123 = por %p121, %p122
      %p124 = scmp.ne.s32.totalorder %s116, %s118
      %p125 = scmp.eq.s32.totalorder %s24, 1
      %p126 = por %p124, %p125
      %p127 = scmp.ne.s32.totalorder %s118, %s119
      %p128 = scmp.eq.s32.totalorder %s24, 0
      %p129 = por %p127, %p128
      %p130 = scmp.ne.s32.totalorder %s118, %s119
      %p131 = scmp.eq.s32.totalorder %s25, 1
      %p132 = por %p130, %p131
      %p134 = scmp.ne.s32.totalorder %s119, %s133
      %p135 = scmp.eq.s32.totalorder %s25, 0
      %p136 = por %p134, %p135
      %s138 = sadd.s32 %s137, 1
      %p141 = scmp.eq.s32.totalorder %s19, 1
      %p142 = scmp.ne.s32.totalorder %s137, %s139
      %p143 = scmp.eq.s32.totalorder %s19, 0
      %p144 = por %p142, %p143
      %p145 = scmp.ne.s32.totalorder %s137, %s139
      %p146 = scmp.eq.s32.totalorder %s24, 1
      %p147 = por %p145, %p146
      %p148 = scmp.ne.s32.totalorder %s139, %s140
      %p149 = scmp.eq.s32.totalorder %s24, 0
      %p150 = por %p148, %p149
      %p151 = scmp.ne.s32.totalorder %s139, %s140
      %p152 = scmp.eq.s32.totalorder %s25, 1
      %p153 = por %p151, %p152
      %p155 = scmp.ne.s32.totalorder %s140, %s154
      %p156 = scmp.eq.s32.totalorder %s25, 0
      %p157 = por %p155, %p156
      %s159 = sadd.s32 %s158, 1
      %p162 = scmp.eq.s32.totalorder %s19, 1
      %p163 = scmp.ne.s32.totalorder %s158, %s160
      %p164 = scmp.eq.s32.totalorder %s19, 0
      %p165 = por %p163, %p164
      %p166 = scmp.ne.s32.totalorder %s158, %s160
      %p167 = scmp.eq.s32.totalorder %s24, 1
      %p168 = por %p166, %p167
      %p169 = scmp.ne.s32.totalorder %s160, %s161
      %p170 = scmp.eq.s32.totalorder %s24, 0
      %p171 = por %p169, %p170
      %p172 = scmp.ne.s32.totalorder %s160, %s161
      %p173 = scmp.eq.s32.totalorder %s25, 1
      %p174 = por %p172, %p173
      %p176 = scmp.ne.s32.totalorder %s161, %s175
      %p177 = scmp.eq.s32.totalorder %s25, 0
      %p178 = por %p176, %p177
      %s180 = sadd.s32 %s179, 1
      %p183 = scmp.eq.s32.totalorder %s19, 1
      %p184 = scmp.ne.s32.totalorder %s179, %s181
      %p185 = scmp.eq.s32.totalorder %s19, 0
      %p186 = por %p184, %p185
      %p187 = scmp.ne.s32.totalorder %s179, %s181
      %p188 = scmp.eq.s32.totalorder %s24, 1
      %p189 = por %p187, %p188
      %p190 = scmp.ne.s32.totalorder %s181, %s182
      %p191 = scmp.eq.s32.totalorder %s24, 0
      %p192 = por %p190, %p191
      %p193 = scmp.ne.s32.totalorder %s181, %s182
      %p194 = scmp.eq.s32.totalorder %s25, 1
      %p195 = por %p193, %p194
      %p197 = scmp.ne.s32.totalorder %s182, %s196
      %p198 = scmp.eq.s32.totalorder %s25, 0
      %p199 = por %p197, %p198
      %s201 = sadd.s32 %s200, 1
      %p204 = scmp.eq.s32.totalorder %s19, 1
      %p205 = scmp.ne.s32.totalorder %s200, %s202
      %p206 = scmp.eq.s32.totalorder %s19, 0
      %p207 = por %p205, %p206
      %p208 = scmp.ne.s32.totalorder %s200, %s202
      %p209 = scmp.eq.s32.totalorder %s24, 1
      %p210 = por %p208, %p209
      %p211 = scmp.ne.s32.totalorder %s202, %s203
      %p212 = scmp.eq.s32.totalorder %s24, 0
      %p213 = por %p211, %p212
      %p214 = scmp.ne.s32.totalorder %s202, %s203
      %p215 = scmp.eq.s32.totalorder %s25, 1
      %p216 = por %p214, %p215
      %p218 = scmp.ne.s32.totalorder %s203, %s217
      %p219 = scmp.eq.s32.totalorder %s25, 0
      %p220 = por %p218, %p219
      %s222 = sadd.s32 %s221, 1
      %p225 = scmp.eq.s32.totalorder %s19, 1
      %p226 = scmp.ne.s32.totalorder %s221, %s223
      %p227 = scmp.eq.s32.totalorder %s19, 0
      %p228 = por %p226, %p227
      %p229 = scmp.ne.s32.totalorder %s221, %s223
      %p230 = scmp.eq.s32.totalorder %s24, 1
      %p231 = por %p229, %p230
      %p232 = scmp.ne.s32.totalorder %s223, %s224
      %p233 = scmp.eq.s32.totalorder %s24, 0
      %p234 = por %p232, %p233
      %p235 = scmp.ne.s32.totalorder %s223, %s224
      %p236 = scmp.eq.s32.totalorder %s25, 1
      %p237 = por %p235, %p236
      %p239 = scmp.ne.s32.totalorder %s224, %s238
      %p240 = scmp.eq.s32.totalorder %s25, 0
      %p241 = por %p239, %p240
      %s242 = ssub.s32 %s19, %s26
      %p243 = scmp.eq.s32.totalorder %s242, 0
      %s245 = sadd.s32 %s244, 1
      %s246 = scalar_select %p243, %s244, %s245
      %p249 = pneg %p243
      %p250 = scmp.eq.s32.totalorder %s19, 1
      %p251 = por %p249, %p250
      %p252 = scmp.ne.s32.totalorder %s244, %s247
      %p253 = scmp.eq.s32.totalorder %s19, 0
      %p254 = por %p252, %p253
      %p255 = scmp.ne.s32.totalorder %s244, %s247
      %p256 = scmp.eq.s32.totalorder %s24, 1
      %p257 = por %p255, %p256
      %p258 = scmp.ne.s32.totalorder %s247, %s248
      %p259 = scmp.eq.s32.totalorder %s24, 0
      %p260 = por %p258, %p259
      %p261 = scmp.ne.s32.totalorder %s247, %s248
      %p262 = scmp.eq.s32.totalorder %s25, 1
      %p263 = por %p261, %p262
      %p265 = scmp.ne.s32.totalorder %s248, %s264
      %p266 = scmp.eq.s32.totalorder %s25, 0
      %p267 = por %p265, %p266
      %p268 = scmp.le.s32.totalorder 1, %s19
      %p269 = scmp.lt.s32.totalorder %s19, 3
      %p270 = pnand %p268, %p269
      %p271 = pneg %p270
      // Predicated region
      $region9: #{tpu_custom_call.1} parent=5 // pred_check
        _
      $region10: #{tpu_custom_call.1} parent=5 // pred_check_branch
        %273 = sbr.rel (%p270) target = $region12
      $region11: #{tpu_custom_call.1} parent=5 // pred_region
        %s274 = ssub.s32 %s19, 1
        // Predicated region
        $region13: #{tpu_custom_call.1} parent=11 // pred_check
          %p275 = pneg %p66
        $region14: #{tpu_custom_call.1} parent=11 // pred_check_branch
          %277 = sbr.rel (%p275) target = $region16
        $region15: #{tpu_custom_call.1} parent=11 // pred_region
          _
        $region16: #{tpu_custom_call.1} parent=11 // pred_fallthru
          _
        // Predicated region
        $region17: #{tpu_custom_call.1} parent=11 // pred_check
          %p278 = pneg %p87
        $region18: #{tpu_custom_call.1} parent=11 // pred_check_branch
          %280 = sbr.rel (%p278) target = $region20
        $region19: #{tpu_custom_call.1} parent=11 // pred_region
          _
        $region20: #{tpu_custom_call.1} parent=11 // pred_fallthru
          _
        // Predicated region
        $region21: #{tpu_custom_call.1} parent=11 // pred_check
          %p281 = pneg %p108
        $region22: #{tpu_custom_call.1} parent=11 // pred_check_branch
          %283 = sbr.rel (%p281) target = $region24
        $region23: #{tpu_custom_call.1} parent=11 // pred_region
          _
        $region24: #{tpu_custom_call.1} parent=11 // pred_fallthru
          _
        // Predicated region
        $region25: #{tpu_custom_call.1} parent=11 // pred_check
          %p284 = pneg %p129
        $region26: #{tpu_custom_call.1} parent=11 // pred_check_branch
          %286 = sbr.rel (%p284) target = $region28
        $region27: #{tpu_custom_call.1} parent=11 // pred_region
          _
        $region28: #{tpu_custom_call.1} parent=11 // pred_fallthru
          _
        // Predicated region
        $region29: #{tpu_custom_call.1} parent=11 // pred_check
          %p287 = pneg %p150
        $region30: #{tpu_custom_call.1} parent=11 // pred_check_branch
          %289 = sbr.rel (%p287) target = $region32
        $region31: #{tpu_custom_call.1} parent=11 // pred_region
          _
        $region32: #{tpu_custom_call.1} parent=11 // pred_fallthru
          _
        // Predicated region
        $region33: #{tpu_custom_call.1} parent=11 // pred_check
          %p290 = pneg %p171
        $region34: #{tpu_custom_call.1} parent=11 // pred_check_branch
          %292 = sbr.rel (%p290) target = $region36
        $region35: #{tpu_custom_call.1} parent=11 // pred_region
          _
        $region36: #{tpu_custom_call.1} parent=11 // pred_fallthru
          _
        // Predicated region
        $region37: #{tpu_custom_call.1} parent=11 // pred_check
          %p293 = pneg %p192
        $region38: #{tpu_custom_call.1} parent=11 // pred_check_branch
          %295 = sbr.rel (%p293) target = $region40
        $region39: #{tpu_custom_call.1} parent=11 // pred_region
          _
        $region40: #{tpu_custom_call.1} parent=11 // pred_fallthru
          _
        // Predicated region
        $region41: #{tpu_custom_call.1} parent=11 // pred_check
          %p296 = pneg %p213
        $region42: #{tpu_custom_call.1} parent=11 // pred_check_branch
          %298 = sbr.rel (%p296) target = $region44
        $region43: #{tpu_custom_call.1} parent=11 // pred_region
          _
        $region44: #{tpu_custom_call.1} parent=11 // pred_fallthru
          _
        // Predicated region
        $region45: #{tpu_custom_call.1} parent=11 // pred_check
          %p299 = pneg %p234
        $region46: #{tpu_custom_call.1} parent=11 // pred_check_branch
          %301 = sbr.rel (%p299) target = $region48
        $region47: #{tpu_custom_call.1} parent=11 // pred_region
          _
        $region48: #{tpu_custom_call.1} parent=11 // pred_fallthru
          _
      $region12: #{tpu_custom_call.1} parent=5 // pred_fallthru
        _
      %p302 = scmp.lt.s32.totalorder %s19, 2
      // Predicated region
      $region49: #{tpu_custom_call.1} parent=5 // pred_check
        %p303 = pneg %p302
      $region50: #{tpu_custom_call.1} parent=5 // pred_check_branch
        %305 = sbr.rel (%p303) target = $region52
      $region51: #{tpu_custom_call.1} parent=5 // pred_region
        // Predicated region
        $region53: #{tpu_custom_call.1} parent=51 // pred_check
          %p306 = pneg %p39
        $region54: #{tpu_custom_call.1} parent=51 // pred_check_branch
          %308 = sbr.rel (%p306) target = $region56
        $region55: #{tpu_custom_call.1} parent=51 // pred_region
          %s309 = smul.u32 4, %s19
          %p310 = scmp.lt.s32.totalorder %s309, 7
          %s311 = scalar_select %p310, %s309, 7
          %s312 = smul.addr %s311, 2
          %s313 = smul.addr %s312, 8
          %s314 = scalar_lea.vmem %s0, %s313
          %s315 = smul.u32 4, %s19
        $region56: #{tpu_custom_call.1} parent=51 // pred_fallthru
          _
      $region52: #{tpu_custom_call.1} parent=5 // pred_fallthru
        _
      %p316 = scmp.le.s32.totalorder 1, %s19
      %p317 = scmp.lt.s32.totalorder %s19, 3
      %p318 = pnand %p316, %p317
      %p319 = pneg %p318
      // Predicated region
      $region57: #{tpu_custom_call.1} parent=5 // pred_check
        _
      $region58: #{tpu_custom_call.1} parent=5 // pred_check_branch
        %321 = sbr.rel (%p318) target = $region60
      $region59: #{tpu_custom_call.1} parent=5 // pred_region
        %s322 = ssub.s32 %s19, 1
        %s323 = smul.u32 4, %s24
        %p324 = scmp.lt.s32.totalorder %s323, 7
        %s325 = scalar_select %p324, %s323, 7
        %s326 = smul.addr %s325, 2
        %s327 = smul.addr %s326, 8
        %s328 = scalar_lea.vmem %s0, %s327
        %p329 = pneg %p45
        %p330 = pneg %p42
        %p331 = pneg %p66
        %p332 = pneg %p63
        %p333 = pneg %p87
        %p334 = pneg %p84
        %p335 = pneg %p108
        %p336 = pneg %p105
        %p337 = pneg %p129
        %p338 = pneg %p126
        %p339 = pneg %p150
        %p340 = pneg %p147
        %p341 = pneg %p171
        %p342 = pneg %p168
        %p343 = pneg %p192
        %p344 = pneg %p189
        %p345 = pneg %p213
        %p346 = pneg %p210
        %p347 = pneg %p234
        %p348 = pneg %p231
        %p349 = pneg %p260
        %p350 = pneg %p257
        %s351 = sand.u32 %s247, 1
        %s352 = scalar_lea.sflag [#allocation3], %s351
        %s353 = sand.u32 %s247, 1
        %s354 = smul.addr %s353, 64
        %s355 = scalar_lea.vmem [#allocation2], %s354
        %s356 = smul.u32 4, %s24
        %p357 = scmp.lt.s32.totalorder %s356, 7
        %s358 = scalar_select %p357, %s356, 7
        %s359 = smul.addr %s358, 2
        %s360 = smul.addr %s359, 8
        %s361 = scalar_lea.vmem %s0, %s360
        %s362 = smul.u32 4, %s24
        %s363 = smul.u32 4, %s24
        %v364 = vld [vmem:[%s361] sm:$0xff]
        %v365 = vld [vmem:[%s361 + $0x8] sm:$0xff]
        %v366 = vld [vmem:[%s361 + $0x10] sm:$0xff]
        %v367 = vld [vmem:[%s361 + $0x18] sm:$0xff]
        %v368 = vld [vmem:[%s361 + $0x20] sm:$0xff]
        %v369 = vld [vmem:[%s361 + $0x28] sm:$0xff]
        %v370 = vld [vmem:[%s361 + $0x30] sm:$0xff]
        %v371 = vld [vmem:[%s361 + $0x38] sm:$0xff]
        %v372 = vld [vmem:[%s1] sm:$0xff]
        %v373 = vld [vmem:[%s1 + $0x8] sm:$0xff]
        %v374 = vld [vmem:[%s1 + $0x10] sm:$0xff]
        %v375 = vld [vmem:[%s1 + $0x18] sm:$0xff]
        %v376 = vld [vmem:[%s1 + $0x20] sm:$0xff]
        %v377 = vld [vmem:[%s1 + $0x28] sm:$0xff]
        %v378 = vld [vmem:[%s1 + $0x30] sm:$0xff]
        %v379 = vld [vmem:[%s1 + $0x38] sm:$0xff]
        %v380 = vld [vmem:[%s1 + $0x40] sm:$0xff]
        %v381 = vld [vmem:[%s1 + $0x48] sm:$0xff]
        %v382 = vld [vmem:[%s1 + $0x50] sm:$0xff]
        %v383 = vld [vmem:[%s1 + $0x58] sm:$0xff]
        %v384 = vld [vmem:[%s1 + $0x60] sm:$0xff]
        %v385 = vld [vmem:[%s1 + $0x68] sm:$0xff]
        %v386 = vld [vmem:[%s1 + $0x70] sm:$0xff]
        %v387 = vld [vmem:[%s1 + $0x78] sm:$0xff]
        %v388 = vld [vmem:[%s1 + $0x80] sm:$0xff]
        %v389 = vld [vmem:[%s1 + $0x88] sm:$0xff]
        %v390 = vld [vmem:[%s1 + $0x90] sm:$0xff]
        %v391 = vld [vmem:[%s1 + $0x98] sm:$0xff]
        %v392 = vld [vmem:[%s1 + $0xa0] sm:$0xff]
        %v393 = vld [vmem:[%s1 + $0xa8] sm:$0xff]
        %v394 = vld [vmem:[%s1 + $0xb0] sm:$0xff]
        %v395 = vld [vmem:[%s1 + $0xb8] sm:$0xff]
        %v396 = vld [vmem:[%s1 + $0xc0] sm:$0xff]
        %v397 = vld [vmem:[%s1 + $0xc8] sm:$0xff]
        %v398 = vld [vmem:[%s1 + $0xd0] sm:$0xff]
        %v399 = vld [vmem:[%s1 + $0xd8] sm:$0xff]
        %v400 = vld [vmem:[%s1 + $0xe0] sm:$0xff]
        %v401 = vld [vmem:[%s1 + $0xe8] sm:$0xff]
        %v402 = vld [vmem:[%s1 + $0xf0] sm:$0xff]
        %v403 = vld [vmem:[%s1 + $0xf8] sm:$0xff]
        %404 = vmatprep.subr.mxu0 0.0
        %405 = vmatpush1.msra.mxu0 %v372
        %406 = vmatprep.subr.mxu0 0.0
        %407 = vmatpush1.msra.mxu0 %v373
        %408 = vmatprep.subr.mxu0 0.0
        %409 = vmatpush1.msra.mxu0 %v374
        %410 = vmatprep.subr.mxu0 0.0
        %411 = vmatpush1.msra.mxu0 %v375
        %412 = vmatprep.subr.mxu0 0.0
        %413 = vmatpush1.msra.mxu0 %v376
        %414 = vmatprep.subr.mxu0 0.0
        %415 = vmatpush1.msra.mxu0 %v377
        %416 = vmatprep.subr.mxu0 0.0
        %417 = vmatpush1.msra.mxu0 %v378
        %418 = vmatprep.subr.mxu0 0.0
        %419 = vmatpush1.msra.mxu0 %v379
        %420 = vmatprep.subr.mxu0 0.0
        %421 = vmatpush1.msra.mxu0 %v380
        %422 = vmatprep.subr.mxu0 0.0
        %423 = vmatpush1.msra.mxu0 %v381
        %424 = vmatprep.subr.mxu0 0.0
        %425 = vmatpush1.msra.mxu0 %v382
        %426 = vmatprep.subr.mxu0 0.0
        %427 = vmatpush1.msra.mxu0 %v383
        %428 = vmatprep.subr.mxu0 0.0
        %429 = vmatpush1.msra.mxu0 %v384
        %430 = vmatprep.subr.mxu0 0.0
        %431 = vmatpush1.msra.mxu0 %v385
        %432 = vmatprep.subr.mxu0 0.0
        %433 = vmatpush1.msra.mxu0 %v386
        %434 = vmatprep.subr.mxu0 0.0
        %435 = vmatpush1.msra.mxu0 %v387
        %436 = vmatprep.subr.mxu0 0.0
        %437 = vmatpush1.msra.mxu0 %v388
        %438 = vmatprep.subr.mxu0 0.0
        %439 = vmatpush1.msra.mxu0 %v389
        %440 = vmatprep.subr.mxu0 0.0
        %441 = vmatpush1.msra.mxu0 %v390
        %442 = vmatprep.subr.mxu0 0.0
        %443 = vmatpush1.msra.mxu0 %v391
        %444 = vmatprep.subr.mxu0 0.0
        %445 = vmatpush1.msra.mxu0 %v392
        %446 = vmatprep.subr.mxu0 0.0
        %447 = vmatpush1.msra.mxu0 %v393
        %448 = vmatprep.subr.mxu0 0.0
        %449 = vmatpush1.msra.mxu0 %v394
        %450 = vmatprep.subr.mxu0 0.0
        %451 = vmatpush1.msra.mxu0 %v395
        %452 = vmatprep.subr.mxu0 0.0
        %453 = vmatpush1.msra.mxu0 %v396
        %454 = vmatprep.subr.mxu0 0.0
        %455 = vmatpush1.msra.mxu0 %v397
        %456 = vmatprep.subr.mxu0 0.0
        %457 = vmatpush1.msra.mxu0 %v398
        %458 = vmatprep.subr.mxu0 0.0
        %459 = vmatpush1.msra.mxu0 %v399
        %460 = vmatprep.subr.mxu0 0.0
        %461 = vmatpush1.msra.mxu0 %v400
        %462 = vmatprep.subr.mxu0 0.0
        %463 = vmatpush1.msra.mxu0 %v401
        %464 = vmatprep.subr.mxu0 0.0
        %465 = vmatpush1.msra.mxu0 %v402
        %466 = vmatprep.subr.mxu0 0.0
        %467 = vmatpush1.msra.mxu0 %v403
        %468 = vmatprep.mubr.f32.mxu0 %v365
        %469 = vmatmul.mubr.f32.gmra.mrb[0].mxu0 %v364
        %v470 = vpop.f32.mrb[0].mxu0
        %v471 = vadd.f32 0.0, %v470
        %v472 = vpop.f32.mrb[0].mxu0
        %473 = vmatprep.mubr.f32.mxu0 %v367
        %474 = vmatmul.mubr.f32.gmra.mrb[0].mxu0 %v366
        %v475 = vpop.f32.mrb[0].mxu0
        %v476 = vadd.f32 0.0, %v475
        %v477 = vpop.f32.mrb[0].mxu0
        %478 = vmatprep.mubr.f32.mxu0 %v369
        %479 = vmatmul.mubr.f32.gmra.mrb[0].mxu0 %v368
        %v480 = vpop.f32.mrb[0].mxu0
        %v481 = vadd.f32 0.0, %v480
        %v482 = vpop.f32.mrb[0].mxu0
        %483 = vmatprep.mubr.f32.mxu0 %v371
        %484 = vmatmul.mubr.f32.gmra.mrb[0].mxu0 %v370
        %v485 = vpop.f32.mrb[0].mxu0
        %v486 = vadd.f32 0.0, %v485
        %v487 = vpop.f32.mrb[0].mxu0
        %488 = vdwg.mxu0
        %v489 = vld [vmem:[%s4] sm:$0xff]
        %v490 = vld [vmem:[%s5] sm:$0xff]
        %492 = vset.pattern.permute.xlu0 0
        %493 = vperm.xlu0 %492, %v490
        %v494 = vpop.permute.xlu0 %493
        %vm496 = vcmask 261120
        %v498 = vsel %vm496, %v489, 0
        %500 = vmatprep.subr.mxu0 0.0
        %501 = vmatpush1.msra.mxu0 %v471
        %502 = vmatprep.subr.mxu0 0.0
        %503 = vmatpush1.msra.mxu0 %v476
        %504 = vmatprep.subr.mxu0 0.0
        %505 = vmatpush1.msra.mxu0 %v481
        %506 = vmatprep.subr.mxu0 0.0
        %507 = vmatpush1.msra.mxu0 %v486
        %508 = vmatprep.subr.mxu0 0.0
        %509 = vmatpush1.msra.mxu0 0.0
        %510 = vmatprep.subr.mxu0 0.0
        %511 = vmatpush1.msra.mxu0 0.0
        %512 = vmatprep.subr.mxu0 0.0
        %513 = vmatpush1.msra.mxu0 0.0
        %514 = vmatprep.subr.mxu0 0.0
        %515 = vmatpush1.msra.mxu0 0.0
        %516 = vmatprep.subr.mxu0 0.0
        %517 = vmatpush1.msra.mxu0 0.0
        %518 = vmatprep.subr.mxu0 0.0
        %519 = vmatpush1.msra.mxu0 0.0
        %520 = vmatprep.subr.mxu0 0.0
        %521 = vmatpush1.msra.mxu0 0.0
        %522 = vmatprep.subr.mxu0 0.0
        %523 = vmatpush1.msra.mxu0 0.0
        %524 = vmatprep.subr.mxu0 0.0
        %525 = vmatpush1.msra.mxu0 0.0
        %526 = vmatprep.subr.mxu0 0.0
        %527 = vmatpush1.msra.mxu0 0.0
        %528 = vmatprep.subr.mxu0 0.0
        %529 = vmatpush1.msra.mxu0 0.0
        %530 = vmatprep.subr.mxu0 0.0
        %531 = vmatpush1.msra.mxu0 0.0
        %532 = vmatprep.subr.mxu0 0.0
        %533 = vmatpush1.msra.mxu0 0.0
        %534 = vmatprep.subr.mxu0 0.0
        %535 = vmatpush1.msra.mxu0 0.0
        %536 = vmatprep.subr.mxu0 0.0
        %537 = vmatpush1.msra.mxu0 0.0
        %538 = vmatprep.subr.mxu0 0.0
        %539 = vmatpush1.msra.mxu0 0.0
        %540 = vmatprep.subr.mxu0 0.0
        %541 = vmatpush1.msra.mxu0 0.0
        %542 = vmatprep.subr.mxu0 0.0
        %543 = vmatpush1.msra.mxu0 0.0
        %544 = vmatprep.subr.mxu0 0.0
        %545 = vmatpush1.msra.mxu0 0.0
        %546 = vmatprep.subr.mxu0 0.0
        %547 = vmatpush1.msra.mxu0 0.0
        %548 = vmatprep.subr.mxu0 0.0
        %549 = vmatpush1.msra.mxu0 0.0
        %550 = vmatprep.subr.mxu0 0.0
        %551 = vmatpush1.msra.mxu0 0.0
        %552 = vmatprep.subr.mxu0 0.0
        %553 = vmatpush1.msra.mxu0 0.0
        %554 = vmatprep.subr.mxu0 0.0
        %555 = vmatpush1.msra.mxu0 0.0
        %556 = vmatprep.subr.mxu0 0.0
        %557 = vmatpush1.msra.mxu0 0.0
        %558 = vmatprep.subr.mxu0 0.0
        %559 = vmatpush1.msra.mxu0 0.0
        %560 = vmatprep.subr.mxu0 0.0
        %561 = vmatpush1.msra.mxu0 0.0
        %562 = vmatprep.subr.mxu0 0.0
        %563 = vmatpush1.msra.mxu0 0.0
        %564 = vmatprep.mubr.f32.mxu0 0.0
        %565 = vmatmul.mubr.f32.gmra.mrb[0].mxu0 %v498
        %v566 = vpop.f32.mrb[0].mxu0
        %v567 = vadd.f32 %v494, %v566
        %v568 = vpop.f32.mrb[0].mxu0
        %569 = vdwg.mxu0
        %v570 = vadd.f32 %v567, 3.0
        %v571 = vmax.f32 %v570, 0.0
        %v572 = vmin.f32 %v571, 6.0
        %v573 = vmul.f32 %v572, 0.16666667
        %v574 = vmul.f32 %v567, %v573
        %v575 = vld [vmem:[%s6] sm:$0xff]
        %v576 = vld [vmem:[%s6 + $0x8] sm:$0xff]
        %v577 = vld [vmem:[%s6 + $0x10] sm:$0xff]
        %v578 = vld [vmem:[%s6 + $0x18] sm:$0xff]
        %v579 = vld [vmem:[%s8] sm:$0xff]
        %v580 = vld [vmem:[%s8 + $0x8] sm:$0xff]
        %v581 = vld [vmem:[%s8 + $0x10] sm:$0xff]
        %v582 = vld [vmem:[%s8 + $0x18] sm:$0xff]
        %v583 = vld [vmem:[%s7] sm:$0xff]
        %v584 = vld [vmem:[%s7 + $0x8] sm:$0xff]
        %v585 = vld [vmem:[%s7 + $0x10] sm:$0xff]
        %v586 = vld [vmem:[%s7 + $0x18] sm:$0xff]
        %588 = vset.pattern.permute.xlu0 0
        %589 = vperm.xlu0 %588, %v583
        %v590 = vpop.permute.xlu0 %589
        %593 = vset.pattern.permute.xlu0 0
        %594 = vperm.xlu0 %593, %v584
        %v595 = vpop.permute.xlu0 %594
        %598 = vset.pattern.permute.xlu0 0
        %599 = vperm.xlu0 %598, %v585
        %v600 = vpop.permute.xlu0 %599
        %603 = vset.pattern.permute.xlu0 0
        %604 = vperm.xlu0 %603, %v586
        %v605 = vpop.permute.xlu0 %604
        %vm607 = vcmask 64512
        %v609 = vsel %vm607, %v575, 0
        %v612 = vsel %vm607, %v576, 0
        %v615 = vsel %vm607, %v577, 0
        %v618 = vsel %vm607, %v578, 0
        %620 = vmatprep.subr.mxu0 0.0
        %621 = vmatpush1.msra.mxu0 %v574
        %622 = vmatprep.subr.mxu0 0.0
        %623 = vmatpush1.msra.mxu0 0.0
        %624 = vmatprep.subr.mxu0 0.0
        %625 = vmatpush1.msra.mxu0 0.0
        %626 = vmatprep.subr.mxu0 0.0
        %627 = vmatpush1.msra.mxu0 0.0
        %628 = vmatprep.subr.mxu0 0.0
        %629 = vmatpush1.msra.mxu0 0.0
        %630 = vmatprep.subr.mxu0 0.0
        %631 = vmatpush1.msra.mxu0 0.0
        %632 = vmatprep.subr.mxu0 0.0
        %633 = vmatpush1.msra.mxu0 0.0
        %634 = vmatprep.subr.mxu0 0.0
        %635 = vmatpush1.msra.mxu0 0.0
        %636 = vmatprep.subr.mxu0 0.0
        %637 = vmatpush1.msra.mxu0 0.0
        %638 = vmatprep.subr.mxu0 0.0
        %639 = vmatpush1.msra.mxu0 0.0
        %640 = vmatprep.subr.mxu0 0.0
        %641 = vmatpush1.msra.mxu0 0.0
        %642 = vmatprep.subr.mxu0 0.0
        %643 = vmatpush1.msra.mxu0 0.0
        %644 = vmatprep.subr.mxu0 0.0
        %645 = vmatpush1.msra.mxu0 0.0
        %646 = vmatprep.subr.mxu0 0.0
        %647 = vmatpush1.msra.mxu0 0.0
        %648 = vmatprep.subr.mxu0 0.0
        %649 = vmatpush1.msra.mxu0 0.0
        %650 = vmatprep.subr.mxu0 0.0
        %651 = vmatpush1.msra.mxu0 0.0
        %652 = vmatprep.subr.mxu0 0.0
        %653 = vmatpush1.msra.mxu0 0.0
        %654 = vmatprep.subr.mxu0 0.0
        %655 = vmatpush1.msra.mxu0 0.0
        %656 = vmatprep.subr.mxu0 0.0
        %657 = vmatpush1.msra.mxu0 0.0
        %658 = vmatprep.subr.mxu0 0.0
        %659 = vmatpush1.msra.mxu0 0.0
        %660 = vmatprep.subr.mxu0 0.0
        %661 = vmatpush1.msra.mxu0 0.0
        %662 = vmatprep.subr.mxu0 0.0
        %663 = vmatpush1.msra.mxu0 0.0
        %664 = vmatprep.subr.mxu0 0.0
        %665 = vmatpush1.msra.mxu0 0.0
        %666 = vmatprep.subr.mxu0 0.0
        %667 = vmatpush1.msra.mxu0 0.0
        %668 = vmatprep.subr.mxu0 0.0
        %669 = vmatpush1.msra.mxu0 0.0
        %670 = vmatprep.subr.mxu0 0.0
        %671 = vmatpush1.msra.mxu0 0.0
        %672 = vmatprep.subr.mxu0 0.0
        %673 = vmatpush1.msra.mxu0 0.0
        %674 = vmatprep.subr.mxu0 0.0
        %675 = vmatpush1.msra.mxu0 0.0
        %676 = vmatprep.subr.mxu0 0.0
        %677 = vmatpush1.msra.mxu0 0.0
        %678 = vmatprep.subr.mxu0 0.0
        %679 = vmatpush1.msra.mxu0 0.0
        %680 = vmatprep.subr.mxu0 0.0
        %681 = vmatpush1.msra.mxu0 0.0
        %682 = vmatprep.subr.mxu0 0.0
        %683 = vmatpush1.msra.mxu0 0.0
        %684 = vmatprep.mubr.f32.mxu0 0.0
        %685 = vmatmul.mubr.f32.gmra.mrb[0].mxu0 %v609
        %v686 = vpop.f32.mrb[0].mxu0
        %v687 = vadd.f32 %v590, %v686
        %v688 = vpop.f32.mrb[0].mxu0
        %689 = vmatprep.mubr.f32.mxu0 0.0
        %690 = vmatmul.mubr.f32.gmra.mrb[0].mxu0 %v612
        %v691 = vpop.f32.mrb[0].mxu0
        %v692 = vadd.f32 %v595, %v691
        %v693 = vpop.f32.mrb[0].mxu0
        %694 = vmatprep.mubr.f32.mxu0 0.0
        %695 = vmatmul.mubr.f32.gmra.mrb[0].mxu0 %v615
        %v696 = vpop.f32.mrb[0].mxu0
        %v697 = vadd.f32 %v600, %v696
        %v698 = vpop.f32.mrb[0].mxu0
        %699 = vmatprep.mubr.f32.mxu0 0.0
        %700 = vmatmul.mubr.f32.gmra.mrb[0].mxu0 %v618
        %v701 = vpop.f32.mrb[0].mxu0
        %v702 = vadd.f32 %v605, %v701
        %v703 = vpop.f32.mrb[0].mxu0
        %704 = vdwg.mxu0
        %v705 = vxor.u32 %v687, 2147483648
        %v706 = vxor.u32 %v692, 2147483648
        %v707 = vxor.u32 %v697, 2147483648
        %v708 = vxor.u32 %v702, 2147483648
        %v709 = vmul.f32 %v705, 1.442695
        %v710 = vpow.pop %v709
        %v711 = vmul.f32 %v706, 1.442695
        %v712 = vpow.pop %v711
        %v713 = vmul.f32 %v707, 1.442695
        %v714 = vpow.pop %v713
        %v715 = vmul.f32 %v708, 1.442695
        %v716 = vpow.pop %v715
        %v717 = vadd.f32 %v710, 1.0
        %v718 = vadd.f32 %v712, 1.0
        %v719 = vadd.f32 %v714, 1.0
        %v720 = vadd.f32 %v716, 1.0
        %v721 = vrcp.pop %v717
        %v722 = vmul.f32 1.0, %v721
        %v723 = vrcp.pop %v718
        %v724 = vmul.f32 1.0, %v723
        %v725 = vrcp.pop %v719
        %v726 = vmul.f32 1.0, %v725
        %v727 = vrcp.pop %v720
        %v728 = vmul.f32 1.0, %v727
        %v729 = vld [vmem:[%s9] sm:$0xff]
        %v730 = vld [vmem:[%s9 + $0x8] sm:$0xff]
        %v731 = vld [vmem:[%s9 + $0x10] sm:$0xff]
        %v732 = vld [vmem:[%s9 + $0x18] sm:$0xff]
        %734 = vset.pattern.permute.xlu0 0
        %735 = vperm.xlu0 %734, %v729
        %v736 = vpop.permute.xlu0 %735
        %739 = vset.pattern.permute.xlu0 0
        %740 = vperm.xlu0 %739, %v730
        %v741 = vpop.permute.xlu0 %740
        %744 = vset.pattern.permute.xlu0 0
        %745 = vperm.xlu0 %744, %v731
        %v746 = vpop.permute.xlu0 %745
        %749 = vset.pattern.permute.xlu0 0
        %750 = vperm.xlu0 %749, %v732
        %v751 = vpop.permute.xlu0 %750
        %754 = vrot.lane.b32.xlu0 %v574, 112
        %v755 = vpop.permute.xlu0 %754
        %v758 = vsel %vm607, %v579, 0
        %v761 = vsel %vm607, %v580, 0
        %v764 = vsel %vm607, %v581, 0
        %v767 = vsel %vm607, %v582, 0
        %769 = vmatprep.subr.mxu0 0.0
        %770 = vmatpush1.msra.mxu0 %v755
        %771 = vmatprep.subr.mxu0 0.0
        %772 = vmatpush1.msra.mxu0 0.0
        %773 = vmatprep.subr.mxu0 0.0
        %774 = vmatpush1.msra.mxu0 0.0
        %775 = vmatprep.subr.mxu0 0.0
        %776 = vmatpush1.msra.mxu0 0.0
        %777 = vmatprep.subr.mxu0 0.0
        %778 = vmatpush1.msra.mxu0 0.0
        %779 = vmatprep.subr.mxu0 0.0
        %780 = vmatpush1.msra.mxu0 0.0
        %781 = vmatprep.subr.mxu0 0.0
        %782 = vmatpush1.msra.mxu0 0.0
        %783 = vmatprep.subr.mxu0 0.0
        %784 = vmatpush1.msra.mxu0 0.0
        %785 = vmatprep.subr.mxu0 0.0
        %786 = vmatpush1.msra.mxu0 0.0
        %787 = vmatprep.subr.mxu0 0.0
        %788 = vmatpush1.msra.mxu0 0.0
        %789 = vmatprep.subr.mxu0 0.0
        %790 = vmatpush1.msra.mxu0 0.0
        %791 = vmatprep.subr.mxu0 0.0
        %792 = vmatpush1.msra.mxu0 0.0
        %793 = vmatprep.subr.mxu0 0.0
        %794 = vmatpush1.msra.mxu0 0.0
        %795 = vmatprep.subr.mxu0 0.0
        %796 = vmatpush1.msra.mxu0 0.0
        %797 = vmatprep.subr.mxu0 0.0
        %798 = vmatpush1.msra.mxu0 0.0
        %799 = vmatprep.subr.mxu0 0.0
        %800 = vmatpush1.msra.mxu0 0.0
        %801 = vmatprep.subr.mxu0 0.0
        %802 = vmatpush1.msra.mxu0 0.0
        %803 = vmatprep.subr.mxu0 0.0
        %804 = vmatpush1.msra.mxu0 0.0
        %805 = vmatprep.subr.mxu0 0.0
        %806 = vmatpush1.msra.mxu0 0.0
        %807 = vmatprep.subr.mxu0 0.0
        %808 = vmatpush1.msra.mxu0 0.0
        %809 = vmatprep.subr.mxu0 0.0
        %810 = vmatpush1.msra.mxu0 0.0
        %811 = vmatprep.subr.mxu0 0.0
        %812 = vmatpush1.msra.mxu0 0.0
        %813 = vmatprep.subr.mxu0 0.0
        %814 = vmatpush1.msra.mxu0 0.0
        %815 = vmatprep.subr.mxu0 0.0
        %816 = vmatpush1.msra.mxu0 0.0
        %817 = vmatprep.subr.mxu0 0.0
        %818 = vmatpush1.msra.mxu0 0.0
        %819 = vmatprep.subr.mxu0 0.0
        %820 = vmatpush1.msra.mxu0 0.0
        %821 = vmatprep.subr.mxu0 0.0
        %822 = vmatpush1.msra.mxu0 0.0
        %823 = vmatprep.subr.mxu0 0.0
        %824 = vmatpush1.msra.mxu0 0.0
        %825 = vmatprep.subr.mxu0 0.0
        %826 = vmatpush1.msra.mxu0 0.0
        %827 = vmatprep.subr.mxu0 0.0
        %828 = vmatpush1.msra.mxu0 0.0
        %829 = vmatprep.subr.mxu0 0.0
        %830 = vmatpush1.msra.mxu0 0.0
        %831 = vmatprep.subr.mxu0 0.0
        %832 = vmatpush1.msra.mxu0 0.0
        %833 = vmatprep.mubr.f32.mxu0 0.0
        %834 = vmatmul.mubr.f32.gmra.mrb[0].mxu0 %v758
        %v835 = vpop.f32.mrb[0].mxu0
        %v836 = vadd.f32 %v736, %v835
        %v837 = vpop.f32.mrb[0].mxu0
        %838 = vmatprep.mubr.f32.mxu0 0.0
        %839 = vmatmul.mubr.f32.gmra.mrb[0].mxu0 %v761
        %v840 = vpop.f32.mrb[0].mxu0
        %v841 = vadd.f32 %v741, %v840
        %v842 = vpop.f32.mrb[0].mxu0
        %843 = vmatprep.mubr.f32.mxu0 0.0
        %844 = vmatmul.mubr.f32.gmra.mrb[0].mxu0 %v764
        %v845 = vpop.f32.mrb[0].mxu0
        %v846 = vadd.f32 %v746, %v845
        %v847 = vpop.f32.mrb[0].mxu0
        %848 = vmatprep.mubr.f32.mxu0 0.0
        %849 = vmatmul.mubr.f32.gmra.mrb[0].mxu0 %v767
        %v850 = vpop.f32.mrb[0].mxu0
        %v851 = vadd.f32 %v751, %v850
        %v852 = vpop.f32.mrb[0].mxu0
        %853 = vdwg.mxu0
        %v854 = vxor.u32 %v836, 2147483648
        %v855 = vxor.u32 %v841, 2147483648
        %v856 = vxor.u32 %v846, 2147483648
        %v857 = vxor.u32 %v851, 2147483648
        %v858 = vmul.f32 %v854, 1.442695
        %v859 = vpow.pop %v858
        %v860 = vmul.f32 %v855, 1.442695
        %v861 = vpow.pop %v860
        %v862 = vmul.f32 %v856, 1.442695
        %v863 = vpow.pop %v862
        %v864 = vmul.f32 %v857, 1.442695
        %v865 = vpow.pop %v864
        %v866 = vadd.f32 %v859, 1.0
        %v867 = vadd.f32 %v861, 1.0
        %v868 = vadd.f32 %v863, 1.0
        %v869 = vadd.f32 %v865, 1.0
        %v870 = vrcp.pop %v866
        %v871 = vmul.f32 1.0, %v870
        %v872 = vrcp.pop %v867
        %v873 = vmul.f32 1.0, %v872
        %v874 = vrcp.pop %v868
        %v875 = vmul.f32 1.0, %v874
        %v876 = vrcp.pop %v869
        %v877 = vmul.f32 1.0, %v876
        %v878 = vld [vmem:[%s2] sm:$0xff]
        %v879 = vld [vmem:[%s2 + $0x8] sm:$0xff]
        %v880 = vld [vmem:[%s2 + $0x10] sm:$0xff]
        %v881 = vld [vmem:[%s2 + $0x18] sm:$0xff]
        %vm882 = vcmask 130048
        %v884 = vsel %vm882, %v722, 0
        %v887 = vsel %vm882, %v724, 0
        %v890 = vsel %vm882, %v726, 0
        %v893 = vsel %vm882, %v728, 0
        %895 = vmatprep.subr.mxu0 %v879
        %896 = vmatpush1.msra.mxu0 %v878
        %897 = vmatprep.subr.mxu0 %v881
        %898 = vmatpush1.msra.mxu0 %v880
        %899 = vmatprep.subr.mxu0 0.0
        %900 = vmatpush1.msra.mxu0 0.0
        %901 = vmatprep.subr.mxu0 0.0
        %902 = vmatpush1.msra.mxu0 0.0
        %903 = vmatprep.subr.mxu0 0.0
        %904 = vmatpush1.msra.mxu0 0.0
        %905 = vmatprep.subr.mxu0 0.0
        %906 = vmatpush1.msra.mxu0 0.0
        %907 = vmatprep.subr.mxu0 0.0
        %908 = vmatpush1.msra.mxu0 0.0
        %909 = vmatprep.subr.mxu0 0.0
        %910 = vmatpush1.msra.mxu0 0.0
        %911 = vmatprep.subr.mxu0 0.0
        %912 = vmatpush1.msra.mxu0 0.0
        %913 = vmatprep.subr.mxu0 0.0
        %914 = vmatpush1.msra.mxu0 0.0
        %915 = vmatprep.subr.mxu0 0.0
        %916 = vmatpush1.msra.mxu0 0.0
        %917 = vmatprep.subr.mxu0 0.0
        %918 = vmatpush1.msra.mxu0 0.0
        %919 = vmatprep.subr.mxu0 0.0
        %920 = vmatpush1.msra.mxu0 0.0
        %921 = vmatprep.subr.mxu0 0.0
        %922 = vmatpush1.msra.mxu0 0.0
        %923 = vmatprep.subr.mxu0 0.0
        %924 = vmatpush1.msra.mxu0 0.0
        %925 = vmatprep.subr.mxu0 0.0
        %926 = vmatpush1.msra.mxu0 0.0
        %927 = vmatprep.subr.mxu0 0.0
        %928 = vmatpush1.msra.mxu0 0.0
        %929 = vmatprep.subr.mxu0 0.0
        %930 = vmatpush1.msra.mxu0 0.0
        %931 = vmatprep.subr.mxu0 0.0
        %932 = vmatpush1.msra.mxu0 0.0
        %933 = vmatprep.subr.mxu0 0.0
        %934 = vmatpush1.msra.mxu0 0.0
        %935 = vmatprep.subr.mxu0 0.0
        %936 = vmatpush1.msra.mxu0 0.0
        %937 = vmatprep.subr.mxu0 0.0
        %938 = vmatpush1.msra.mxu0 0.0
        %939 = vmatprep.subr.mxu0 0.0
        %940 = vmatpush1.msra.mxu0 0.0
        %941 = vmatprep.subr.mxu0 0.0
        %942 = vmatpush1.msra.mxu0 0.0
        %943 = vmatprep.subr.mxu0 0.0
        %944 = vmatpush1.msra.mxu0 0.0
        %945 = vmatprep.subr.mxu0 0.0
        %946 = vmatpush1.msra.mxu0 0.0
        %947 = vmatprep.subr.mxu0 0.0
        %948 = vmatpush1.msra.mxu0 0.0
        %949 = vmatprep.subr.mxu0 0.0
        %950 = vmatpush1.msra.mxu0 0.0
        %951 = vmatprep.subr.mxu0 0.0
        %952 = vmatpush1.msra.mxu0 0.0
        %953 = vmatprep.subr.mxu0 0.0
        %954 = vmatpush1.msra.mxu0 0.0
        %955 = vmatprep.subr.mxu0 0.0
        %956 = vmatpush1.msra.mxu0 0.0
        %957 = vmatprep.subr.mxu0 0.0
        %958 = vmatpush1.msra.mxu0 0.0
        %959 = vmatprep.mubr.f32.mxu0 0.0
        %960 = vmatmul.mubr.f32.gmra.mrb[0].mxu0 %v884
        %v961 = vpop.f32.mrb[0].mxu0
        %v962 = vadd.f32 0.0, %v961
        %v963 = vpop.f32.mrb[0].mxu0
        %v964 = vadd.f32 0.0, %v963
        %965 = vmatprep.mubr.f32.mxu0 0.0
        %966 = vmatmul.mubr.f32.gmra.mrb[0].mxu0 %v887
        %v967 = vpop.f32.mrb[0].mxu0
        %v968 = vadd.f32 0.0, %v967
        %v969 = vpop.f32.mrb[0].mxu0
        %v970 = vadd.f32 0.0, %v969
        %971 = vmatprep.mubr.f32.mxu0 0.0
        %972 = vmatmul.mubr.f32.gmra.mrb[0].mxu0 %v890
        %v973 = vpop.f32.mrb[0].mxu0
        %v974 = vadd.f32 0.0, %v973
        %v975 = vpop.f32.mrb[0].mxu0
        %v976 = vadd.f32 0.0, %v975
        %977 = vmatprep.mubr.f32.mxu0 0.0
        %978 = vmatmul.mubr.f32.gmra.mrb[0].mxu0 %v893
        %v979 = vpop.f32.mrb[0].mxu0
        %v980 = vadd.f32 0.0, %v979
        %v981 = vpop.f32.mrb[0].mxu0
        %v982 = vadd.f32 0.0, %v981
        %983 = vdwg.mxu0
        %v984 = vld [vmem:[%s3] sm:$0xff]
        %v985 = vld [vmem:[%s3 + $0x8] sm:$0xff]
        %v986 = vld [vmem:[%s3 + $0x10] sm:$0xff]
        %v987 = vld [vmem:[%s3 + $0x18] sm:$0xff]
        %v989 = vsel %vm882, %v871, 0
        %v992 = vsel %vm882, %v873, 0
        %v995 = vsel %vm882, %v875, 0
        %v998 = vsel %vm882, %v877, 0
        %1000 = vmatprep.subr.mxu0 %v985
        %1001 = vmatpush1.msra.mxu0 %v984
        %1002 = vmatprep.subr.mxu0 %v987
        %1003 = vmatpush1.msra.mxu0 %v986
        %1004 = vmatprep.subr.mxu0 0.0
        %1005 = vmatpush1.msra.mxu0 0.0
        %1006 = vmatprep.subr.mxu0 0.0
        %1007 = vmatpush1.msra.mxu0 0.0
        %1008 = vmatprep.subr.mxu0 0.0
        %1009 = vmatpush1.msra.mxu0 0.0
        %1010 = vmatprep.subr.mxu0 0.0
        %1011 = vmatpush1.msra.mxu0 0.0
        %1012 = vmatprep.subr.mxu0 0.0
        %1013 = vmatpush1.msra.mxu0 0.0
        %1014 = vmatprep.subr.mxu0 0.0
        %1015 = vmatpush1.msra.mxu0 0.0
        %1016 = vmatprep.subr.mxu0 0.0
        %1017 = vmatpush1.msra.mxu0 0.0
        %1018 = vmatprep.subr.mxu0 0.0
        %1019 = vmatpush1.msra.mxu0 0.0
        %1020 = vmatprep.subr.mxu0 0.0
        %1021 = vmatpush1.msra.mxu0 0.0
        %1022 = vmatprep.subr.mxu0 0.0
        %1023 = vmatpush1.msra.mxu0 0.0
        %1024 = vmatprep.subr.mxu0 0.0
        %1025 = vmatpush1.msra.mxu0 0.0
        %1026 = vmatprep.subr.mxu0 0.0
        %1027 = vmatpush1.msra.mxu0 0.0
        %1028 = vmatprep.subr.mxu0 0.0
        %1029 = vmatpush1.msra.mxu0 0.0
        %1030 = vmatprep.subr.mxu0 0.0
        %1031 = vmatpush1.msra.mxu0 0.0
        %1032 = vmatprep.subr.mxu0 0.0
        %1033 = vmatpush1.msra.mxu0 0.0
        %1034 = vmatprep.subr.mxu0 0.0
        %1035 = vmatpush1.msra.mxu0 0.0
        %1036 = vmatprep.subr.mxu0 0.0
        %1037 = vmatpush1.msra.mxu0 0.0
        %1038 = vmatprep.subr.mxu0 0.0
        %1039 = vmatpush1.msra.mxu0 0.0
        %1040 = vmatprep.subr.mxu0 0.0
        %1041 = vmatpush1.msra.mxu0 0.0
        %1042 = vmatprep.subr.mxu0 0.0
        %1043 = vmatpush1.msra.mxu0 0.0
        %1044 = vmatprep.subr.mxu0 0.0
        %1045 = vmatpush1.msra.mxu0 0.0
        %1046 = vmatprep.subr.mxu0 0.0
        %1047 = vmatpush1.msra.mxu0 0.0
        %1048 = vmatprep.subr.mxu0 0.0
        %1049 = vmatpush1.msra.mxu0 0.0
        %1050 = vmatprep.subr.mxu0 0.0
        %1051 = vmatpush1.msra.mxu0 0.0
        %1052 = vmatprep.subr.mxu0 0.0
        %1053 = vmatpush1.msra.mxu0 0.0
        %1054 = vmatprep.subr.mxu0 0.0
        %1055 = vmatpush1.msra.mxu0 0.0
        %1056 = vmatprep.subr.mxu0 0.0
        %1057 = vmatpush1.msra.mxu0 0.0
        %1058 = vmatprep.subr.mxu0 0.0
        %1059 = vmatpush1.msra.mxu0 0.0
        %1060 = vmatprep.subr.mxu0 0.0
        %1061 = vmatpush1.msra.mxu0 0.0
        %1062 = vmatprep.subr.mxu0 0.0
        %1063 = vmatpush1.msra.mxu0 0.0
        %1064 = vmatprep.mubr.f32.mxu0 0.0
        %1065 = vmatmul.mubr.f32.gmra.mrb[0].mxu0 %v989
        %v1066 = vpop.f32.mrb[0].mxu0
        %v1067 = vadd.f32 0.0, %v1066
        %v1068 = vpop.f32.mrb[0].mxu0
        %v1069 = vadd.f32 0.0, %v1068
        %1070 = vmatprep.mubr.f32.mxu0 0.0
        %1071 = vmatmul.mubr.f32.gmra.mrb[0].mxu0 %v992
        %v1072 = vpop.f32.mrb[0].mxu0
        %v1073 = vadd.f32 0.0, %v1072
        %v1074 = vpop.f32.mrb[0].mxu0
        %v1075 = vadd.f32 0.0, %v1074
        %1076 = vmatprep.mubr.f32.mxu0 0.0
        %1077 = vmatmul.mubr.f32.gmra.mrb[0].mxu0 %v995
        %v1078 = vpop.f32.mrb[0].mxu0
        %v1079 = vadd.f32 0.0, %v1078
        %v1080 = vpop.f32.mrb[0].mxu0
        %v1081 = vadd.f32 0.0, %v1080
        %1082 = vmatprep.mubr.f32.mxu0 0.0
        %1083 = vmatmul.mubr.f32.gmra.mrb[0].mxu0 %v998
        %v1084 = vpop.f32.mrb[0].mxu0
        %v1085 = vadd.f32 0.0, %v1084
        %v1086 = vpop.f32.mrb[0].mxu0
        %v1087 = vadd.f32 0.0, %v1086
        %1088 = vdwg.mxu0
        %v1089 = vmul.f32 %v364, %v1067
        %v1090 = vmul.f32 %v365, %v1069
        %v1091 = vmul.f32 %v366, %v1073
        %v1092 = vmul.f32 %v367, %v1075
        %v1093 = vmul.f32 %v368, %v1079
        %v1094 = vmul.f32 %v369, %v1081
        %v1095 = vmul.f32 %v370, %v1085
        %v1096 = vmul.f32 %v371, %v1087
        %v1097 = vmul.f32 %v1089, %v962
        %v1098 = vmul.f32 %v1090, %v964
        %v1099 = vmul.f32 %v1091, %v968
        %v1100 = vmul.f32 %v1092, %v970
        %v1101 = vmul.f32 %v1093, %v974
        %v1102 = vmul.f32 %v1094, %v976
        %v1103 = vmul.f32 %v1095, %v980
        %v1104 = vmul.f32 %v1096, %v982
        %1105 = vst [vmem:[%s355] sm:$0xff] %v1097
        %1106 = vst [vmem:[%s355 + $0x8] sm:$0xff] %v1098
        %1107 = vst [vmem:[%s355 + $0x10] sm:$0xff] %v1099
        %1108 = vst [vmem:[%s355 + $0x18] sm:$0xff] %v1100
        %1109 = vst [vmem:[%s355 + $0x20] sm:$0xff] %v1101
        %1110 = vst [vmem:[%s355 + $0x28] sm:$0xff] %v1102
        %1111 = vst [vmem:[%s355 + $0x30] sm:$0xff] %v1103
        %1112 = vst [vmem:[%s355 + $0x38] sm:$0xff] %v1104
        %s1113 = sand.u32 %s247, 1
        %s1114 = scalar_lea.sflag [#allocation3], %s1113
        %s1115 = sand.u32 %s247, 1
        %s1116 = smul.addr %s1115, 64
        %s1117 = scalar_lea.vmem [#allocation2], %s1116
        // Predicated region
        $region61: #{tpu_custom_call.1} parent=59 // pred_check
          %p1118 = pneg %p257
        $region62: #{tpu_custom_call.1} parent=59 // pred_check_branch
          %1120 = sbr.rel (%p1118) target = $region64
        $region63: #{tpu_custom_call.1} parent=59 // pred_region
          %s1121 = smul.u32 4, %s24
          %s1123 = ssub.s32 1024, 1024
          %1124 = vsyncadd %s1114, %s1123
          %s1125 = smul.addr %s1121, 2
          %s1126 = smul.addr %s1125, 128
          %s1127 = scalar_lea.hbm %s10, %s1126
          %s1128 = sshll.u32 %s1117, 4
          %s1129 = int_to_ptr.vmem [resolvable:$true] %s1128
          %1134 = dma.vmem_to_hbm [thread:$0]  %s1129, 1024, %s1127, %s1114, 256, 256, 16
        $region64: #{tpu_custom_call.1} parent=59 // pred_fallthru
          _
      $region60: #{tpu_custom_call.1} parent=5 // pred_fallthru
        _
      %p1135 = scmp.le.s32.totalorder 2, %s19
      // Predicated region
      $region65: #{tpu_custom_call.1} parent=5 // pred_check
        %p1136 = pneg %p1135
      $region66: #{tpu_custom_call.1} parent=5 // pred_check_branch
        %1138 = sbr.rel (%p1136) target = $region68
      $region67: #{tpu_custom_call.1} parent=5 // pred_region
        %s1139 = ssub.s32 %s19, 2
        // Predicated region
        $region69: #{tpu_custom_call.1} parent=67 // pred_check
          %p1140 = pneg %p263
        $region70: #{tpu_custom_call.1} parent=67 // pred_check_branch
          %1142 = sbr.rel (%p1140) target = $region72
        $region71: #{tpu_custom_call.1} parent=67 // pred_region
          %s1143 = sand.u32 %s248, 1
          %s1144 = scalar_lea.sflag [#allocation3], %s1143
          %s1145 = sand.u32 %s248, 1
          %s1146 = smul.addr %s1145, 64
          %s1147 = scalar_lea.vmem [#allocation2], %s1146
          %1148 = dma.done %s1144, 1024
        $region72: #{tpu_custom_call.1} parent=67 // pred_fallthru
          _
      $region68: #{tpu_custom_call.1} parent=5 // pred_fallthru
        _
    $region6: #{tpu_custom_call.1} parent=1 // loop_footer
      %s23 = sadd.s32 1, %s19
    $region7: #{tpu_custom_call.1} parent=1 // loop_footer_branch
      %18 = sbr.rel target = $region3
    $region8: #{tpu_custom_call.1} parent=1 // loop_exit
      _
    %1149 = vsyncpa [#allocation3], 1
    %s1150 = scalar_lea.sflag [#allocation3], 1
    %1151 = vsyncpa %s1150, 1

</llo_original>
